<compile_context>
chip_gen: v7x
topology: tpu7x:2x2x1
jax: 0.10.0
libtpu: 0.0.40
codegen_flags: <defaults>
</compile_context>

<pallas_src>
import functools
import math

import jax
import jax.numpy as jnp
from jax.experimental import pallas as pl
from jax.experimental.pallas import tpu as pltpu


LEAKY_SLOPE = 0.01  # torch.nn.functional.leaky_relu default


def _label_predict_kernel(x_ref, m_ref, w1_ref, b1_ref, w2_ref, b2_ref,
                          logit_ref, label_ref):
    x = x_ref[...]                      # (cin, TM)  -- M on lanes
    m = m_ref[...]                      # (1, TM)

    # block1: 1x1 "conv" == channel matmul, + bias, * mask, leaky_relu
    h = jnp.dot(w1_ref[...], x, preferred_element_type=jnp.float32)  # (hid, TM)
    h = (h + b1_ref[...]) * m
    h = jnp.maximum(h, LEAKY_SLOPE * h)  # leaky_relu, single VPU max

    # block2: 1x1 "conv", + bias, * mask (no activation)
    logit = jnp.dot(w2_ref[...], h, preferred_element_type=jnp.float32)  # (nout, TM)
    logit = (logit + b2_ref[...]) * m
    logit_ref[...] = logit

    # argmax over the channel (sublane) axis, keepdim, first-max index.
    # nout is tiny (default 2): pure-VPU unrolled compare chain, no XLU.
    nout = logit.shape[0]
    best_val = logit[0:1, :]
    best_idx = jnp.zeros_like(best_val)
    for c in range(1, nout):
        cur = logit[c:c + 1, :]
        greater = cur > best_val            # strict > keeps earliest index on ties
        best_idx = jnp.where(greater, jnp.float32(c), best_idx)
        best_val = jnp.where(greater, cur, best_val)
    label_ref[...] = best_idx


@functools.partial(jax.jit, static_argnames=("tile_m",))
def label_predict_forward(x, mask, w1, b1, w2, b2, *, tile_m=512):
    """x: [B, H, W, Cin] float32, mask: [B, H, W, 1] float32 (0/1).

    Returns (logit [B, H, W, nout], label [B, H, W, 1]).
    """
    B, H, W, cin = x.shape
    hidden = w1.shape[1]
    nout = w2.shape[1]
    M = B * H * W

    # lane-aligned tile, padded (cdiv) grid -> any M is accepted
    tile_m = max(128, (int(tile_m) // 128) * 128)
    n_tiles = pl.cdiv(M, tile_m)
    M_pad = n_tiles * tile_m

    # channel-first, lane-dense layout (M on the 128-wide lane axis)
    xT = x.reshape(M, cin).T            # (cin, M)
    mT = mask.reshape(M, 1).T           # (1, M)
    if M_pad != M:
        xT = jnp.pad(xT, ((0, 0), (0, M_pad - M)))
        mT = jnp.pad(mT, ((0, 0), (0, M_pad - M)))

    w1t = w1.T                          # (hidden, cin)
    b1c = b1.reshape(hidden, 1)
    w2t = w2.T                          # (nout, hidden)
    b2c = b2.reshape(nout, 1)

    grid = (n_tiles,)
    logit_t, label_t = pl.pallas_call(
        _label_predict_kernel,
        out_shape=(
            jax.ShapeDtypeStruct((nout, M_pad), jnp.float32),
            jax.ShapeDtypeStruct((1, M_pad), jnp.float32),
        ),
        grid_spec=pltpu.PrefetchScalarGridSpec(
            num_scalar_prefetch=0,
            grid=grid,
            in_specs=[
                pl.BlockSpec((cin, tile_m), lambda i: (0, i)),
                pl.BlockSpec((1, tile_m), lambda i: (0, i)),
                # tiny weights/biases: constant index_map -> stay resident
                pl.BlockSpec((hidden, cin), lambda i: (0, 0)),
                pl.BlockSpec((hidden, 1), lambda i: (0, 0)),
                pl.BlockSpec((nout, hidden), lambda i: (0, 0)),
                pl.BlockSpec((nout, 1), lambda i: (0, 0)),
            ],
            out_specs=[
                pl.BlockSpec((nout, tile_m), lambda i: (0, i)),
                pl.BlockSpec((1, tile_m), lambda i: (0, i)),
            ],
        ),
        compiler_params=pltpu.CompilerParams(
            # parallel grid: lets v7x shard steps across its 2 TensorCores
            dimension_semantics=("parallel",)),
    )(xT, mT, w1t, b1c, w2t, b2c)

    logit = logit_t[:, :M].T.reshape(B, H, W, nout)
    label = label_t[:, :M].T.reshape(B, H, W, 1)
    return logit, label


def _init_params(key, nin, hidden, nout):
    """Deterministic init matching OctreeConv2D.__init__ (size=1 kernels)."""
    k1, k2, k3, k4 = jax.random.split(key, 4)
    stdv1 = 1.0 / math.sqrt(float(1 * 1 * nin))
    stdv2 = 1.0 / math.sqrt(float(1 * 1 * hidden))
    # kernel shape (1, 1, nin, nout) -> squeezed to (nin, nout)
    w1 = jax.random.uniform(k1, (nin, hidden), jnp.float32, -stdv1, stdv1)
    b1 = jax.random.uniform(k2, (hidden,), jnp.float32, -stdv1, stdv1)
    w2 = jax.random.uniform(k3, (hidden, nout), jnp.float32, -stdv2, stdv2)
    b2 = jax.random.uniform(k4, (nout,), jnp.float32, -stdv2, stdv2)
    return w1, b1, w2, b2


def _reference_forward(x, mask, w1, b1, w2, b2):
    h = (jnp.einsum("bhwc,cd->bhwd", x, w1) + mask * b1) * mask
    h = jnp.where(h >= 0, h, LEAKY_SLOPE * h)
    logit = (jnp.einsum("bhwc,cd->bhwd", h, w2) + mask * b2) * mask
    label = jnp.argmax(logit, axis=-1, keepdims=True).astype(jnp.float32)
    return logit, label


if __name__ == "__main__":
    B, H, W = 2, 16, 16
    nin, hidden, nout = 4, 32, 2

    key = jax.random.PRNGKey(0)
    kx, km, kp = jax.random.split(key, 3)

    x = jax.random.normal(kx, (B, H, W, nin), dtype=jnp.float32)
    # sparse occupancy mask: ~50% of octree cells active
    mask = (jax.random.uniform(km, (B, H, W, 1)) < 0.5).astype(jnp.float32)
    x = x * mask  # sparse values only exist at active cells

    w1, b1, w2, b2 = _init_params(kp, nin, hidden, nout)

    # M = 512 here; tile_m=256 gives a 2-step parallel grid (v7x megacore).
    logit, label = label_predict_forward(x, mask, w1, b1, w2, b2, tile_m=256)
    jax.block_until_ready((logit, label))

    ref_logit, ref_label = _reference_forward(x, mask, w1, b1, w2, b2)
    assert jnp.allclose(logit, ref_logit, atol=1e-4, rtol=1e-4)
    assert jnp.allclose(label, ref_label)

    print("KERNEL_OK")
</pallas_src>

<mosaic_0001>
module attributes {stable_mosaic.version = 11 : i64} {
  func.func @_label_predict_kernel(%arg0: i32, %arg1: memref<4x256xf32, #tpu.memory_space<vmem>>, %arg2: memref<1x256xf32, #tpu.memory_space<vmem>>, %arg3: memref<32x4xf32, #tpu.memory_space<vmem>>, %arg4: memref<32x1xf32, #tpu.memory_space<vmem>>, %arg5: memref<2x32xf32, #tpu.memory_space<vmem>>, %arg6: memref<2x1xf32, #tpu.memory_space<vmem>>, %arg7: memref<2x256xf32, #tpu.memory_space<vmem>>, %arg8: memref<1x256xf32, #tpu.memory_space<vmem>>) attributes {dimension_semantics = [#tpu.dimension_semantics<parallel>], iteration_bounds = array<i64: 2>, scalar_prefetch = 0 : i64, scratch_operands = 0 : i64, tpu.core_type = #tpu.core_type<tc>, window_params = [{transform_indices = @transform_0, window_bounds = array<i64: 4, 256>}, {transform_indices = @transform_1, window_bounds = array<i64: 1, 256>}, {pipeline_mode = #tpu.pipeline_mode<synchronous>, transform_indices = @transform_2, window_bounds = array<i64: 32, 4>}, {pipeline_mode = #tpu.pipeline_mode<synchronous>, transform_indices = @transform_3, window_bounds = array<i64: 32, 1>}, {pipeline_mode = #tpu.pipeline_mode<synchronous>, transform_indices = @transform_4, window_bounds = array<i64: 2, 32>}, {pipeline_mode = #tpu.pipeline_mode<synchronous>, transform_indices = @transform_5, window_bounds = array<i64: 2, 1>}, {transform_indices = @transform_6, window_bounds = array<i64: 2, 256>}, {transform_indices = @transform_7, window_bounds = array<i64: 1, 256>}]} {
    %c0 = arith.constant 0 : index
    %c0_0 = arith.constant 0 : index
    %0 = vector.load %arg1[%c0, %c0_0] : memref<4x256xf32, #tpu.memory_space<vmem>>, vector<4x256xf32>
    %c0_1 = arith.constant 0 : index
    %c0_2 = arith.constant 0 : index
    %1 = vector.load %arg2[%c0_1, %c0_2] : memref<1x256xf32, #tpu.memory_space<vmem>>, vector<1x256xf32>
    %c0_3 = arith.constant 0 : index
    %c0_4 = arith.constant 0 : index
    %2 = vector.load %arg3[%c0_3, %c0_4] : memref<32x4xf32, #tpu.memory_space<vmem>>, vector<32x4xf32>
    %cst = arith.constant dense<0.000000e+00> : vector<32x256xf32>
    %3 = tpu.matmul %2, %0, %cst {dimension_numbers = #tpu.dot_dimension_numbers<[1], [0], [0], [1], [0, 0, 1, 1], [], []>} : vector<32x4xf32>, vector<4x256xf32>, vector<32x256xf32> -> vector<32x256xf32>
    %c0_5 = arith.constant 0 : index
    %c0_6 = arith.constant 0 : index
    %4 = vector.load %arg4[%c0_5, %c0_6] : memref<32x1xf32, #tpu.memory_space<vmem>>, vector<32x1xf32>
    %5 = vector.broadcast %4 : vector<32x1xf32> to vector<32x256xf32>
    %6 = arith.addf %3, %5 : vector<32x256xf32>
    %7 = vector.broadcast %1 : vector<1x256xf32> to vector<32x256xf32>
    %8 = arith.mulf %6, %7 : vector<32x256xf32>
    %cst_7 = arith.constant 0.00999999977 : f32
    %9 = vector.broadcast %cst_7 : f32 to vector<32x256xf32>
    %10 = arith.mulf %9, %8 : vector<32x256xf32>
    %11 = arith.maximumf %8, %10 : vector<32x256xf32>
    %c0_8 = arith.constant 0 : index
    %c0_9 = arith.constant 0 : index
    %12 = vector.load %arg5[%c0_8, %c0_9] : memref<2x32xf32, #tpu.memory_space<vmem>>, vector<2x32xf32>
    %cst_10 = arith.constant dense<0.000000e+00> : vector<2x256xf32>
    %13 = tpu.matmul %12, %11, %cst_10 {dimension_numbers = #tpu.dot_dimension_numbers<[1], [0], [0], [1], [0, 0, 1, 1], [], []>} : vector<2x32xf32>, vector<32x256xf32>, vector<2x256xf32> -> vector<2x256xf32>
    %c0_11 = arith.constant 0 : index
    %c0_12 = arith.constant 0 : index
    %14 = vector.load %arg6[%c0_11, %c0_12] : memref<2x1xf32, #tpu.memory_space<vmem>>, vector<2x1xf32>
    %15 = vector.broadcast %14 : vector<2x1xf32> to vector<2x256xf32>
    %16 = arith.addf %13, %15 : vector<2x256xf32>
    %17 = vector.broadcast %1 : vector<1x256xf32> to vector<2x256xf32>
    %18 = arith.mulf %16, %17 : vector<2x256xf32>
    %c0_13 = arith.constant 0 : index
    %c0_14 = arith.constant 0 : index
    %19 = vector.load %arg7[%c0_13, %c0_14] : memref<2x256xf32, #tpu.memory_space<vmem>>, vector<2x256xf32>
    tpu.vector_store %arg7[%c0_13, %c0_14], %18 {strides = array<i32>} : memref<2x256xf32, #tpu.memory_space<vmem>>, vector<2x256xf32>,
    %20 = vector.extract_strided_slice %18 {offsets = [0, 0], sizes = [1, 256], strides = [1, 1]} : vector<2x256xf32> to vector<1x256xf32>
    %cst_15 = arith.constant 0.000000e+00 : f32
    %21 = vector.broadcast %cst_15 : f32 to vector<1x256xf32>
    %22 = vector.extract_strided_slice %18 {offsets = [1, 0], sizes = [1, 256], strides = [1, 1]} : vector<2x256xf32> to vector<1x256xf32>
    %23 = arith.cmpf ogt, %22, %20 : vector<1x256xf32>
    %cst_16 = arith.constant 1.000000e+00 : f32
    %24 = vector.broadcast %cst_16 : f32 to vector<1x256xf32>
    %25 = arith.select %23, %24, %21 : vector<1x256xi1>, vector<1x256xf32>
    %c0_17 = arith.constant 0 : index
    %c0_18 = arith.constant 0 : index
    %26 = vector.load %arg8[%c0_17, %c0_18] : memref<1x256xf32, #tpu.memory_space<vmem>>, vector<1x256xf32>
    tpu.vector_store %arg8[%c0_17, %c0_18], %25 {strides = array<i32>} : memref<1x256xf32, #tpu.memory_space<vmem>>, vector<1x256xf32>,
    return
  }
  func.func @transform_0(%arg0: i32) -> (i32, i32) {
    %c0_i32 = arith.constant 0 : i32
    %c0_i32_0 = arith.constant 0 : i32
    return %c0_i32, %arg0 : i32, i32
  }
  func.func @transform_1(%arg0: i32) -> (i32, i32) {
    %c0_i32 = arith.constant 0 : i32
    %c0_i32_0 = arith.constant 0 : i32
    return %c0_i32, %arg0 : i32, i32
  }
  func.func @transform_2(%arg0: i32) -> (i32, i32) {
    %c0_i32 = arith.constant 0 : i32
    %c0_i32_0 = arith.constant 0 : i32
    %c0_i32_1 = arith.constant 0 : i32
    return %c0_i32, %c0_i32_0 : i32, i32
  }
  func.func @transform_3(%arg0: i32) -> (i32, i32) {
    %c0_i32 = arith.constant 0 : i32
    %c0_i32_0 = arith.constant 0 : i32
    %c0_i32_1 = arith.constant 0 : i32
    return %c0_i32, %c0_i32_0 : i32, i32
  }
  func.func @transform_4(%arg0: i32) -> (i32, i32) {
    %c0_i32 = arith.constant 0 : i32
    %c0_i32_0 = arith.constant 0 : i32
    %c0_i32_1 = arith.constant 0 : i32
    return %c0_i32, %c0_i32_0 : i32, i32
  }
  func.func @transform_5(%arg0: i32) -> (i32, i32) {
    %c0_i32 = arith.constant 0 : i32
    %c0_i32_0 = arith.constant 0 : i32
    %c0_i32_1 = arith.constant 0 : i32
    return %c0_i32, %c0_i32_0 : i32, i32
  }
  func.func @transform_6(%arg0: i32) -> (i32, i32) {
    %c0_i32 = arith.constant 0 : i32
    %c0_i32_0 = arith.constant 0 : i32
    return %c0_i32, %arg0 : i32, i32
  }
  func.func @transform_7(%arg0: i32) -> (i32, i32) {
    %c0_i32 = arith.constant 0 : i32
    %c0_i32_0 = arith.constant 0 : i32
    return %c0_i32, %arg0 : i32, i32
  }
}

</mosaic_0001>

<llo_original>
// kernel: label_predict_forward.1
$region0: #{label_predict_forward.1}
  #allocation0 [shape = 'u32[]', space=smem, size = 0x4, offset = 0x4, fixed_abs, tag = 'smem constant byte address 0x4 - core index']
  #allocation1 [shape = 'u32[144,128]{1,0:T(1,128)}', space=vmem, size = 0x12000, scoped, tag = 'internal scratch']
  %s0 = inlined_call_operand.vmem [shape: f32[4,512], index: 0, kind: input, shape index: {}]
  %s1 = inlined_call_operand.vmem [shape: f32[1,512], index: 1, kind: input, shape index: {}]
  %s2 = inlined_call_operand.vmem [shape: f32[32,4], index: 2, kind: input, shape index: {}]
  %s3 = inlined_call_operand.vmem [shape: f32[32,1], index: 3, kind: input, shape index: {}]
  %s4 = inlined_call_operand.vmem [shape: f32[2,32], index: 4, kind: input, shape index: {}]
  %s5 = inlined_call_operand.vmem [shape: f32[2,1], index: 5, kind: input, shape index: {}]
  %s6 = inlined_call_operand.vmem [shape: f32[2,512], index: 6, kind: output, shape index: {0}]
  %s7 = inlined_call_operand.vmem [shape: f32[1,512], index: 7, kind: output, shape index: {1}]
  %8 = xla_tuple %s6, %s7
  %s9 = sld [smem:[#allocation0]]
  $region65: #{label_predict_forward.1} parent=0
    _
  %s11 = ssub.s32 1, %s9
  %s12 = scalar_select 0, %s11, %s9
  loop: start=0, step=1, limit=4
  $region2: #{label_predict_forward.1} parent=0 // loop_pre_header
    _
  $region3: #{label_predict_forward.1} parent=0 // loop_header
    %s14 = sphi 0, %s18
    %p15 = scmp.ge.s32.totalorder %s14, 4
    %s24 = sphi 0, %s26
    %s27 = sphi 0, %s24
    %s28 = sphi 0, %s27
    %s44 = sphi 0, %s28
    %s50 = sphi 0, %s52
    %s53 = sphi 0, %s50
    %s54 = sphi 0, %s53
    %s70 = sphi 0, %s54
    %s74 = sphi 0, %s74
    %s76 = sphi 0, %s74
    %s77 = sphi 0, %s76
    %s91 = sphi 0, %s77
    %s95 = sphi 0, %s95
    %s97 = sphi 0, %s95
    %s98 = sphi 0, %s97
    %s112 = sphi 0, %s98
    %s116 = sphi 0, %s116
    %s118 = sphi 0, %s116
    %s119 = sphi 0, %s118
    %s133 = sphi 0, %s119
    %s137 = sphi 0, %s137
    %s139 = sphi 0, %s137
    %s140 = sphi 0, %s139
    %s154 = sphi 0, %s140
    %s160 = sphi 0, %s162
    %s163 = sphi 0, %s160
    %s164 = sphi 0, %s163
    %s180 = sphi 0, %s164
    %s186 = sphi 0, %s188
    %s189 = sphi 0, %s186
    %s190 = sphi 0, %s189
    %s206 = sphi 0, %s190
  $region4: #{label_predict_forward.1} parent=0 // loop_header_branch
    %17 = sbr.rel (%p15) target = $region8
  $region5: #{label_predict_forward.1} parent=0 // loop_body
    %s19 = ssub.s32 %s14, 1
    %s20 = ssub.s32 %s14, 2
    %s21 = sadd.s32 %s14, 1
    %s22 = ssub.s32 %s14, %s21
    %p23 = scmp.eq.s32.totalorder %s22, 0
    %s25 = sadd.s32 %s24, 1
    %s26 = scalar_select %p23, %s24, %s25
    %p29 = pneg %p23
    %p30 = scmp.eq.s32.totalorder %s14, 1
    %p31 = por %p29, %p30
    %p32 = scmp.ne.s32.totalorder %s24, %s27
    %p33 = scmp.eq.s32.totalorder %s14, 0
    %p34 = por %p32, %p33
    %p35 = scmp.ne.s32.totalorder %s24, %s27
    %p36 = scmp.eq.s32.totalorder %s19, 1
    %p37 = por %p35, %p36
    %p38 = scmp.ne.s32.totalorder %s27, %s28
    %p39 = scmp.eq.s32.totalorder %s19, 0
    %p40 = por %p38, %p39
    %p41 = scmp.ne.s32.totalorder %s27, %s28
    %p42 = scmp.eq.s32.totalorder %s20, 1
    %p43 = por %p41, %p42
    %p45 = scmp.ne.s32.totalorder %s28, %s44
    %p46 = scmp.eq.s32.totalorder %s20, 0
    %p47 = por %p45, %p46
    %s48 = ssub.s32 %s14, %s21
    %p49 = scmp.eq.s32.totalorder %s48, 0
    %s51 = sadd.s32 %s50, 1
    %s52 = scalar_select %p49, %s50, %s51
    %p55 = pneg %p49
    %p56 = scmp.eq.s32.totalorder %s14, 1
    %p57 = por %p55, %p56
    %p58 = scmp.ne.s32.totalorder %s50, %s53
    %p59 = scmp.eq.s32.totalorder %s14, 0
    %p60 = por %p58, %p59
    %p61 = scmp.ne.s32.totalorder %s50, %s53
    %p62 = scmp.eq.s32.totalorder %s19, 1
    %p63 = por %p61, %p62
    %p64 = scmp.ne.s32.totalorder %s53, %s54
    %p65 = scmp.eq.s32.totalorder %s19, 0
    %p66 = por %p64, %p65
    %p67 = scmp.ne.s32.totalorder %s53, %s54
    %p68 = scmp.eq.s32.totalorder %s20, 1
    %p69 = por %p67, %p68
    %p71 = scmp.ne.s32.totalorder %s54, %s70
    %p72 = scmp.eq.s32.totalorder %s20, 0
    %p73 = por %p71, %p72
    %s75 = sadd.s32 %s74, 1
    %p78 = scmp.eq.s32.totalorder %s14, 1
    %p79 = scmp.ne.s32.totalorder %s74, %s76
    %p80 = scmp.eq.s32.totalorder %s14, 0
    %p81 = por %p79, %p80
    %p82 = scmp.ne.s32.totalorder %s74, %s76
    %p83 = scmp.eq.s32.totalorder %s19, 1
    %p84 = por %p82, %p83
    %p85 = scmp.ne.s32.totalorder %s76, %s77
    %p86 = scmp.eq.s32.totalorder %s19, 0
    %p87 = por %p85, %p86
    %p88 = scmp.ne.s32.totalorder %s76, %s77
    %p89 = scmp.eq.s32.totalorder %s20, 1
    %p90 = por %p88, %p89
    %p92 = scmp.ne.s32.totalorder %s77, %s91
    %p93 = scmp.eq.s32.totalorder %s20, 0
    %p94 = por %p92, %p93
    %s96 = sadd.s32 %s95, 1
    %p99 = scmp.eq.s32.totalorder %s14, 1
    %p100 = scmp.ne.s32.totalorder %s95, %s97
    %p101 = scmp.eq.s32.totalorder %s14, 0
    %p102 = por %p100, %p101
    %p103 = scmp.ne.s32.totalorder %s95, %s97
    %p104 = scmp.eq.s32.totalorder %s19, 1
    %p105 = por %p103, %p104
    %p106 = scmp.ne.s32.totalorder %s97, %s98
    %p107 = scmp.eq.s32.totalorder %s19, 0
    %p108 = por %p106, %p107
    %p109 = scmp.ne.s32.totalorder %s97, %s98
    %p110 = scmp.eq.s32.totalorder %s20, 1
    %p111 = por %p109, %p110
    %p113 = scmp.ne.s32.totalorder %s98, %s112
    %p114 = scmp.eq.s32.totalorder %s20, 0
    %p115 = por %p113, %p114
    %s117 = sadd.s32 %s116, 1
    %p120 = scmp.eq.s32.totalorder %s14, 1
    %p121 = scmp.ne.s32.totalorder %s116, %s118
    %p122 = scmp.eq.s32.totalorder %s14, 0
    %p123 = por %p121, %p122
    %p124 = scmp.ne.s32.totalorder %s116, %s118
    %p125 = scmp.eq.s32.totalorder %s19, 1
    %p126 = por %p124, %p125
    %p127 = scmp.ne.s32.totalorder %s118, %s119
    %p128 = scmp.eq.s32.totalorder %s19, 0
    %p129 = por %p127, %p128
    %p130 = scmp.ne.s32.totalorder %s118, %s119
    %p131 = scmp.eq.s32.totalorder %s20, 1
    %p132 = por %p130, %p131
    %p134 = scmp.ne.s32.totalorder %s119, %s133
    %p135 = scmp.eq.s32.totalorder %s20, 0
    %p136 = por %p134, %p135
    %s138 = sadd.s32 %s137, 1
    %p141 = scmp.eq.s32.totalorder %s14, 1
    %p142 = scmp.ne.s32.totalorder %s137, %s139
    %p143 = scmp.eq.s32.totalorder %s14, 0
    %p144 = por %p142, %p143
    %p145 = scmp.ne.s32.totalorder %s137, %s139
    %p146 = scmp.eq.s32.totalorder %s19, 1
    %p147 = por %p145, %p146
    %p148 = scmp.ne.s32.totalorder %s139, %s140
    %p149 = scmp.eq.s32.totalorder %s19, 0
    %p150 = por %p148, %p149
    %p151 = scmp.ne.s32.totalorder %s139, %s140
    %p152 = scmp.eq.s32.totalorder %s20, 1
    %p153 = por %p151, %p152
    %p155 = scmp.ne.s32.totalorder %s140, %s154
    %p156 = scmp.eq.s32.totalorder %s20, 0
    %p157 = por %p155, %p156
    %s158 = ssub.s32 %s14, %s21
    %p159 = scmp.eq.s32.totalorder %s158, 0
    %s161 = sadd.s32 %s160, 1
    %s162 = scalar_select %p159, %s160, %s161
    %p165 = pneg %p159
    %p166 = scmp.eq.s32.totalorder %s14, 1
    %p167 = por %p165, %p166
    %p168 = scmp.ne.s32.totalorder %s160, %s163
    %p169 = scmp.eq.s32.totalorder %s14, 0
    %p170 = por %p168, %p169
    %p171 = scmp.ne.s32.totalorder %s160, %s163
    %p172 = scmp.eq.s32.totalorder %s19, 1
    %p173 = por %p171, %p172
    %p174 = scmp.ne.s32.totalorder %s163, %s164
    %p175 = scmp.eq.s32.totalorder %s19, 0
    %p176 = por %p174, %p175
    %p177 = scmp.ne.s32.totalorder %s163, %s164
    %p178 = scmp.eq.s32.totalorder %s20, 1
    %p179 = por %p177, %p178
    %p181 = scmp.ne.s32.totalorder %s164, %s180
    %p182 = scmp.eq.s32.totalorder %s20, 0
    %p183 = por %p181, %p182
    %s184 = ssub.s32 %s14, %s21
    %p185 = scmp.eq.s32.totalorder %s184, 0
    %s187 = sadd.s32 %s186, 1
    %s188 = scalar_select %p185, %s186, %s187
    %p191 = pneg %p185
    %p192 = scmp.eq.s32.totalorder %s14, 1
    %p193 = por %p191, %p192
    %p194 = scmp.ne.s32.totalorder %s186, %s189
    %p195 = scmp.eq.s32.totalorder %s14, 0
    %p196 = por %p194, %p195
    %p197 = scmp.ne.s32.totalorder %s186, %s189
    %p198 = scmp.eq.s32.totalorder %s19, 1
    %p199 = por %p197, %p198
    %p200 = scmp.ne.s32.totalorder %s189, %s190
    %p201 = scmp.eq.s32.totalorder %s19, 0
    %p202 = por %p200, %p201
    %p203 = scmp.ne.s32.totalorder %s189, %s190
    %p204 = scmp.eq.s32.totalorder %s20, 1
    %p205 = por %p203, %p204
    %p207 = scmp.ne.s32.totalorder %s190, %s206
    %p208 = scmp.eq.s32.totalorder %s20, 0
    %p209 = por %p207, %p208
    %p210 = scmp.le.s32.totalorder 1, %s14
    %p211 = scmp.lt.s32.totalorder %s14, 3
    %p212 = pnand %p210, %p211
    %p213 = pneg %p212
    // Predicated region
    $region9: #{label_predict_forward.1} parent=5 // pred_check
      _
    $region10: #{label_predict_forward.1} parent=5 // pred_check_branch
      %215 = sbr.rel (%p212) target = $region12
    $region11: #{label_predict_forward.1} parent=5 // pred_region
      %s216 = ssub.s32 %s14, 1
      // Predicated region
      $region13: #{label_predict_forward.1} parent=11 // pred_check
        %p217 = pneg %p87
      $region14: #{label_predict_forward.1} parent=11 // pred_check_branch
        %219 = sbr.rel (%p217) target = $region16
      $region15: #{label_predict_forward.1} parent=11 // pred_region
        _
      $region16: #{label_predict_forward.1} parent=11 // pred_fallthru
        _
      // Predicated region
      $region17: #{label_predict_forward.1} parent=11 // pred_check
        %p220 = pneg %p108
      $region18: #{label_predict_forward.1} parent=11 // pred_check_branch
        %222 = sbr.rel (%p220) target = $region20
      $region19: #{label_predict_forward.1} parent=11 // pred_region
        _
      $region20: #{label_predict_forward.1} parent=11 // pred_fallthru
        _
      // Predicated region
      $region21: #{label_predict_forward.1} parent=11 // pred_check
        %p223 = pneg %p129
      $region22: #{label_predict_forward.1} parent=11 // pred_check_branch
        %225 = sbr.rel (%p223) target = $region24
      $region23: #{label_predict_forward.1} parent=11 // pred_region
        _
      $region24: #{label_predict_forward.1} parent=11 // pred_fallthru
        _
      // Predicated region
      $region25: #{label_predict_forward.1} parent=11 // pred_check
        %p226 = pneg %p150
      $region26: #{label_predict_forward.1} parent=11 // pred_check_branch
        %228 = sbr.rel (%p226) target = $region28
      $region27: #{label_predict_forward.1} parent=11 // pred_region
        _
      $region28: #{label_predict_forward.1} parent=11 // pred_fallthru
        _
    $region12: #{label_predict_forward.1} parent=5 // pred_fallthru
      _
    %p229 = scmp.lt.s32.totalorder %s14, 2
    // Predicated region
    $region29: #{label_predict_forward.1} parent=5 // pred_check
      %p230 = pneg %p229
    $region30: #{label_predict_forward.1} parent=5 // pred_check_branch
      %232 = sbr.rel (%p230) target = $region32
    $region31: #{label_predict_forward.1} parent=5 // pred_region
      // Predicated region
      $region33: #{label_predict_forward.1} parent=31 // pred_check
        %p233 = pneg %p34
      $region34: #{label_predict_forward.1} parent=31 // pred_check_branch
        %235 = sbr.rel (%p233) target = $region36
      $region35: #{label_predict_forward.1} parent=31 // pred_region
        %s236 = smul.u32 2, %s14
        %p237 = scmp.lt.s32.totalorder %s236, 3
        %s238 = scalar_select %p237, %s236, 3
        %s239 = smul.addr %s238, 4
        %s240 = scalar_lea.vmem %s0, %s239
        %s241 = smul.u32 2, %s14
      $region36: #{label_predict_forward.1} parent=31 // pred_fallthru
        _
      // Predicated region
      $region37: #{label_predict_forward.1} parent=31 // pred_check
        %p242 = pneg %p60
      $region38: #{label_predict_forward.1} parent=31 // pred_check_branch
        %244 = sbr.rel (%p242) target = $region40
      $region39: #{label_predict_forward.1} parent=31 // pred_region
        %s245 = smul.u32 2, %s14
        %p246 = scmp.lt.s32.totalorder %s245, 3
        %s247 = scalar_select %p246, %s245, 3
        %s248 = scalar_lea.vmem %s1, %s247
        %s249 = smul.u32 2, %s14
      $region40: #{label_predict_forward.1} parent=31 // pred_fallthru
        _
    $region32: #{label_predict_forward.1} parent=5 // pred_fallthru
      _
    %p250 = scmp.le.s32.totalorder 1, %s14
    %p251 = scmp.lt.s32.totalorder %s14, 3
    %p252 = pnand %p250, %p251
    %p253 = pneg %p252
    // Predicated region
    $region41: #{label_predict_forward.1} parent=5 // pred_check
      _
    $region42: #{label_predict_forward.1} parent=5 // pred_check_branch
      %255 = sbr.rel (%p252) target = $region44
    $region43: #{label_predict_forward.1} parent=5 // pred_region
      %s256 = ssub.s32 %s14, 1
      %s257 = smul.u32 2, %s19
      %p258 = scmp.lt.s32.totalorder %s257, 3
      %s259 = scalar_select %p258, %s257, 3
      %s260 = smul.addr %s259, 4
      %s261 = scalar_lea.vmem %s0, %s260
      %p262 = pneg %p40
      %p263 = pneg %p37
      %s264 = smul.u32 2, %s19
      %p265 = scmp.lt.s32.totalorder %s264, 3
      %s266 = scalar_select %p265, %s264, 3
      %s267 = scalar_lea.vmem %s1, %s266
      %p268 = pneg %p66
      %p269 = pneg %p63
      %p270 = pneg %p87
      %p271 = pneg %p84
      %p272 = pneg %p108
      %p273 = pneg %p105
      %p274 = pneg %p129
      %p275 = pneg %p126
      %p276 = pneg %p150
      %p277 = pneg %p147
      %p278 = pneg %p176
      %p279 = pneg %p173
      %s280 = smul.u32 2, %s19
      %p281 = scmp.lt.s32.totalorder %s280, 3
      %s282 = scalar_select %p281, %s280, 3
      %s283 = smul.addr %s282, 2
      %s284 = scalar_lea.vmem %s6, %s283
      %p285 = pneg %p202
      %p286 = pneg %p199
      %s287 = smul.u32 2, %s19
      %p288 = scmp.lt.s32.totalorder %s287, 3
      %s289 = scalar_select %p288, %s287, 3
      %s290 = scalar_lea.vmem %s7, %s289
      %s291 = smul.u32 2, %s19
      %p292 = scmp.lt.s32.totalorder %s291, 3
      %s293 = scalar_select %p292, %s291, 3
      %s294 = smul.addr %s293, 4
      %s295 = scalar_lea.vmem %s0, %s294
      %s296 = smul.u32 2, %s19
      %s297 = smul.u32 2, %s19
      %p298 = scmp.lt.s32.totalorder %s297, 3
      %s299 = scalar_select %p298, %s297, 3
      %s300 = scalar_lea.vmem %s1, %s299
      %s301 = smul.u32 2, %s19
      %s302 = smul.u32 2, %s19
      %p303 = scmp.lt.s32.totalorder %s302, 3
      %s304 = scalar_select %p303, %s302, 3
      %s305 = smul.addr %s304, 2
      %s306 = scalar_lea.vmem %s6, %s305
      %s307 = smul.u32 2, %s19
      %s308 = smul.u32 2, %s19
      %p309 = scmp.lt.s32.totalorder %s308, 3
      %s310 = scalar_select %p309, %s308, 3
      %s311 = scalar_lea.vmem %s7, %s310
      %s312 = smul.u32 2, %s19
      %v313 = vld [vmem:[%s295] sm:$0xff]
      %v314 = vld [vmem:[%s300] sm:$0x3]
      %v315 = vld [vmem:[%s2] sm:$0xff]
      %v316 = vld [vmem:[%s2 + $0x8] sm:$0xff]
      %v317 = vld [vmem:[%s2 + $0x10] sm:$0xff]
      %v318 = vld [vmem:[%s2 + $0x18] sm:$0xff]
      %v319 = vld [vmem:[%s3] sm:$0xff]
      %v320 = vld [vmem:[%s3 + $0x8] sm:$0xff]
      %v321 = vld [vmem:[%s3 + $0x10] sm:$0xff]
      %v322 = vld [vmem:[%s3 + $0x18] sm:$0xff]
      %324 = vset.pattern.permute.xlu0 0
      %325 = vperm.xlu0 %324, %v319
      %v326 = vpop.permute.xlu0 %325
      %329 = vset.pattern.permute.xlu0 0
      %330 = vperm.xlu0 %329, %v320
      %v331 = vpop.permute.xlu0 %330
      %334 = vset.pattern.permute.xlu0 0
      %335 = vperm.xlu0 %334, %v321
      %v336 = vpop.permute.xlu0 %335
      %339 = vset.pattern.permute.xlu0 0
      %340 = vperm.xlu0 %339, %v322
      %v341 = vpop.permute.xlu0 %340
      %v344 = vcombine.high %v313, %v313
      %vm345 = vcmask 31744
      %v347 = vsel %vm345, %v315, 0
      %v350 = vsel %vm345, %v316, 0
      %v353 = vsel %vm345, %v317, 0
      %v356 = vsel %vm345, %v318, 0
      %vm358 = vcmask 1043456
      %v359 = vsel %vm358, %v313, 0
      %v361 = vsel %vm358, %v344, 0
      %363 = vmatprep.subr.mxu0 %v361
      %364 = vmatpush1.msra.mxu0 %v359
      %365 = vmatprep.subr.mxu0 0.0
      %366 = vmatpush1.msra.mxu0 0.0
      %367 = vmatprep.subr.mxu0 0.0
      %368 = vmatpush1.msra.mxu0 0.0
      %369 = vmatprep.subr.mxu0 0.0
      %370 = vmatpush1.msra.mxu0 0.0
      %371 = vmatprep.subr.mxu0 0.0
      %372 = vmatpush1.msra.mxu0 0.0
      %373 = vmatprep.subr.mxu0 0.0
      %374 = vmatpush1.msra.mxu0 0.0
      %375 = vmatprep.subr.mxu0 0.0
      %376 = vmatpush1.msra.mxu0 0.0
      %377 = vmatprep.subr.mxu0 0.0
      %378 = vmatpush1.msra.mxu0 0.0
      %379 = vmatprep.subr.mxu0 0.0
      %380 = vmatpush1.msra.mxu0 0.0
      %381 = vmatprep.subr.mxu0 0.0
      %382 = vmatpush1.msra.mxu0 0.0
      %383 = vmatprep.subr.mxu0 0.0
      %384 = vmatpush1.msra.mxu0 0.0
      %385 = vmatprep.subr.mxu0 0.0
      %386 = vmatpush1.msra.mxu0 0.0
      %387 = vmatprep.subr.mxu0 0.0
      %388 = vmatpush1.msra.mxu0 0.0
      %389 = vmatprep.subr.mxu0 0.0
      %390 = vmatpush1.msra.mxu0 0.0
      %391 = vmatprep.subr.mxu0 0.0
      %392 = vmatpush1.msra.mxu0 0.0
      %393 = vmatprep.subr.mxu0 0.0
      %394 = vmatpush1.msra.mxu0 0.0
      %395 = vmatprep.subr.mxu0 0.0
      %396 = vmatpush1.msra.mxu0 0.0
      %397 = vmatprep.subr.mxu0 0.0
      %398 = vmatpush1.msra.mxu0 0.0
      %399 = vmatprep.subr.mxu0 0.0
      %400 = vmatpush1.msra.mxu0 0.0
      %401 = vmatprep.subr.mxu0 0.0
      %402 = vmatpush1.msra.mxu0 0.0
      %403 = vmatprep.subr.mxu0 0.0
      %404 = vmatpush1.msra.mxu0 0.0
      %405 = vmatprep.subr.mxu0 0.0
      %406 = vmatpush1.msra.mxu0 0.0
      %407 = vmatprep.subr.mxu0 0.0
      %408 = vmatpush1.msra.mxu0 0.0
      %409 = vmatprep.subr.mxu0 0.0
      %410 = vmatpush1.msra.mxu0 0.0
      %411 = vmatprep.subr.mxu0 0.0
      %412 = vmatpush1.msra.mxu0 0.0
      %413 = vmatprep.subr.mxu0 0.0
      %414 = vmatpush1.msra.mxu0 0.0
      %415 = vmatprep.subr.mxu0 0.0
      %416 = vmatpush1.msra.mxu0 0.0
      %417 = vmatprep.subr.mxu0 0.0
      %418 = vmatpush1.msra.mxu0 0.0
      %419 = vmatprep.subr.mxu0 0.0
      %420 = vmatpush1.msra.mxu0 0.0
      %421 = vmatprep.subr.mxu0 0.0
      %422 = vmatpush1.msra.mxu0 0.0
      %423 = vmatprep.subr.mxu0 0.0
      %424 = vmatpush1.msra.mxu0 0.0
      %425 = vmatprep.subr.mxu0 0.0
      %426 = vmatpush1.msra.mxu0 0.0
      %427 = vmatprep.mubr.f32.mxu0 0.0
      %428 = vmatmul.mubr.f32.gmra.mrb[0].mxu0 %v347
      %v429 = vpop.f32.mrb[0].mxu0
      %v430 = vadd.f32 %v326, %v429
      %v431 = vpop.f32.mrb[0].mxu0
      %v432 = vadd.f32 %v326, %v431
      %433 = vmatprep.mubr.f32.mxu0 0.0
      %434 = vmatmul.mubr.f32.gmra.mrb[0].mxu0 %v350
      %v435 = vpop.f32.mrb[0].mxu0
      %v436 = vadd.f32 %v331, %v435
      %v437 = vpop.f32.mrb[0].mxu0
      %v438 = vadd.f32 %v331, %v437
      %439 = vmatprep.mubr.f32.mxu0 0.0
      %440 = vmatmul.mubr.f32.gmra.mrb[0].mxu0 %v353
      %v441 = vpop.f32.mrb[0].mxu0
      %v442 = vadd.f32 %v336, %v441
      %v443 = vpop.f32.mrb[0].mxu0
      %v444 = vadd.f32 %v336, %v443
      %445 = vmatprep.mubr.f32.mxu0 0.0
      %446 = vmatmul.mubr.f32.gmra.mrb[0].mxu0 %v356
      %v447 = vpop.f32.mrb[0].mxu0
      %v448 = vadd.f32 %v341, %v447
      %v449 = vpop.f32.mrb[0].mxu0
      %v450 = vadd.f32 %v341, %v449
      %451 = vdwg.mxu0
      %v453 = vlaneseq
      %v454 = vshrl.u32 %v453, 7
      %v455 = vsub.s32 0, %v454
      %v456 = vrot.slane %v314, %v455
      %v457 = vlaneseq
      %v458 = vshrl.u32 %v457, 7
      %v459 = vsub.s32 1, %v458
      %v460 = vrot.slane %v314, %v459
      %v463 = vmul.f32 %v430, %v456
      %v464 = vmul.f32 %v432, %v460
      %v465 = vmul.f32 %v436, %v456
      %v466 = vmul.f32 %v438, %v460
      %v467 = vmul.f32 %v442, %v456
      %v468 = vmul.f32 %v444, %v460
      %v469 = vmul.f32 %v448, %v456
      %v470 = vmul.f32 %v450, %v460
      %v471 = vmul.f32 %v463, 0.01
      %v472 = vmul.f32 %v464, 0.01
      %v473 = vmul.f32 %v465, 0.01
      %v474 = vmul.f32 %v466, 0.01
      %v475 = vmul.f32 %v467, 0.01
      %v476 = vmul.f32 %v468, 0.01
      %v477 = vmul.f32 %v469, 0.01
      %v478 = vmul.f32 %v470, 0.01
      %v479 = vmax.f32 %v463, %v471
      %v480 = vmax.f32 %v464, %v472
      %v481 = vmax.f32 %v465, %v473
      %v482 = vmax.f32 %v466, %v474
      %v483 = vmax.f32 %v467, %v475
      %v484 = vmax.f32 %v468, %v476
      %v485 = vmax.f32 %v469, %v477
      %v486 = vmax.f32 %v470, %v478
      %v487 = vld [vmem:[%s4] sm:$0x3]
      %v488 = vld [vmem:[%s5] sm:$0x3]
      %490 = vset.pattern.permute.xlu0 0
      %491 = vperm.xlu0 %490, %v488
      %v492 = vpop.permute.xlu0 %491
      %vm494 = vcmask 261120
      %v496 = vsel %vm494, %v487, 0
      %498 = vmatprep.subr.mxu0 %v480
      %499 = vmatpush1.msra.mxu0 %v479
      %500 = vmatprep.subr.mxu0 %v482
      %501 = vmatpush1.msra.mxu0 %v481
      %502 = vmatprep.subr.mxu0 %v484
      %503 = vmatpush1.msra.mxu0 %v483
      %504 = vmatprep.subr.mxu0 %v486
      %505 = vmatpush1.msra.mxu0 %v485
      %506 = vmatprep.subr.mxu0 0.0
      %507 = vmatpush1.msra.mxu0 0.0
      %508 = vmatprep.subr.mxu0 0.0
      %509 = vmatpush1.msra.mxu0 0.0
      %510 = vmatprep.subr.mxu0 0.0
      %511 = vmatpush1.msra.mxu0 0.0
      %512 = vmatprep.subr.mxu0 0.0
      %513 = vmatpush1.msra.mxu0 0.0
      %514 = vmatprep.subr.mxu0 0.0
      %515 = vmatpush1.msra.mxu0 0.0
      %516 = vmatprep.subr.mxu0 0.0
      %517 = vmatpush1.msra.mxu0 0.0
      %518 = vmatprep.subr.mxu0 0.0
      %519 = vmatpush1.msra.mxu0 0.0
      %520 = vmatprep.subr.mxu0 0.0
      %521 = vmatpush1.msra.mxu0 0.0
      %522 = vmatprep.subr.mxu0 0.0
      %523 = vmatpush1.msra.mxu0 0.0
      %524 = vmatprep.subr.mxu0 0.0
      %525 = vmatpush1.msra.mxu0 0.0
      %526 = vmatprep.subr.mxu0 0.0
      %527 = vmatpush1.msra.mxu0 0.0
      %528 = vmatprep.subr.mxu0 0.0
      %529 = vmatpush1.msra.mxu0 0.0
      %530 = vmatprep.subr.mxu0 0.0
      %531 = vmatpush1.msra.mxu0 0.0
      %532 = vmatprep.subr.mxu0 0.0
      %533 = vmatpush1.msra.mxu0 0.0
      %534 = vmatprep.subr.mxu0 0.0
      %535 = vmatpush1.msra.mxu0 0.0
      %536 = vmatprep.subr.mxu0 0.0
      %537 = vmatpush1.msra.mxu0 0.0
      %538 = vmatprep.subr.mxu0 0.0
      %539 = vmatpush1.msra.mxu0 0.0
      %540 = vmatprep.subr.mxu0 0.0
      %541 = vmatpush1.msra.mxu0 0.0
      %542 = vmatprep.subr.mxu0 0.0
      %543 = vmatpush1.msra.mxu0 0.0
      %544 = vmatprep.subr.mxu0 0.0
      %545 = vmatpush1.msra.mxu0 0.0
      %546 = vmatprep.subr.mxu0 0.0
      %547 = vmatpush1.msra.mxu0 0.0
      %548 = vmatprep.subr.mxu0 0.0
      %549 = vmatpush1.msra.mxu0 0.0
      %550 = vmatprep.subr.mxu0 0.0
      %551 = vmatpush1.msra.mxu0 0.0
      %552 = vmatprep.subr.mxu0 0.0
      %553 = vmatpush1.msra.mxu0 0.0
      %554 = vmatprep.subr.mxu0 0.0
      %555 = vmatpush1.msra.mxu0 0.0
      %556 = vmatprep.subr.mxu0 0.0
      %557 = vmatpush1.msra.mxu0 0.0
      %558 = vmatprep.subr.mxu0 0.0
      %559 = vmatpush1.msra.mxu0 0.0
      %560 = vmatprep.subr.mxu0 0.0
      %561 = vmatpush1.msra.mxu0 0.0
      %562 = vmatprep.mubr.f32.mxu0 0.0
      %563 = vmatmul.mubr.f32.gmra.mrb[0].mxu0 %v496
      %v564 = vpop.f32.mrb[0].mxu0
      %v565 = vadd.f32 %v492, %v564
      %v566 = vpop.f32.mrb[0].mxu0
      %v567 = vadd.f32 %v492, %v566
      %568 = vdwg.mxu0
      %v569 = vmul.f32 %v565, %v456
      %v570 = vmul.f32 %v567, %v460
      %v573 = vcombine.low %v569, %v570
      %v575 = vunpack.c.l.s4 1983009808
      %v576 = vunpack.c.0.s8 %v575
      %v577 = vlaneseq
      %v578 = vshrl.u32 %v577, 7
      %v579 = vsub.s32 %v576, %v578
      %v580 = vrot.slane %v573, %v579
      %582 = vst [vmem:[%s306] sm:$0xf] %v580
      %v583 = vrot.slane %v569, 7
      %v584 = vrot.slane %v570, 7
      %vm587 = vcmp.gt.f32.partialorder %v569, %v583
      %vm588 = vcmp.gt.f32.partialorder %v570, %v584
      %v589 = vsel %vm587, 1.0, 0.0
      %v590 = vsel %vm588, 1.0, 0.0
      %v593 = vcombine.low %v589, %v590
      %v595 = vunpack.c.l.s4 1966171168
      %v596 = vunpack.c.0.s8 %v595
      %v597 = vlaneseq
      %v598 = vshrl.u32 %v597, 7
      %v599 = vsub.s32 %v596, %v598
      %v600 = vrot.slane %v593, %v599
      %v601 = vcombine.high %v600, %v600
      %v603 = vunpack.c.l.s4 1966171168
      %v604 = vunpack.c.0.s8 %v603
      %v605 = vlaneseq
      %v606 = vshrl.u32 %v605, 7
      %v607 = vsub.s32 %v604, %v606
      %v608 = vrot.slane %v601, %v607
      %v610 = vlaneseq
      %vm611 = vcmp.ge.s32.totalorder %v610, 0
      %vm612 = vcmp.lt.s32.totalorder %v610, 256
      %vm613 = vmand %vm611, %vm612
      %614 = vst.msk [vmem:[%s311] sm:$0x3] %vm613, %v608
      %s615 = smul.u32 2, %s19
      %p616 = scmp.lt.s32.totalorder %s615, 3
      %s617 = scalar_select %p616, %s615, 3
      %s618 = smul.addr %s617, 2
      %s619 = scalar_lea.vmem %s6, %s618
      %s620 = smul.u32 2, %s19
      %p621 = scmp.lt.s32.totalorder %s620, 3
      %s622 = scalar_select %p621, %s620, 3
      %s623 = scalar_lea.vmem %s7, %s622
      // Predicated region
      $region45: #{label_predict_forward.1} parent=43 // pred_check
        %p624 = pneg %p173
      $region46: #{label_predict_forward.1} parent=43 // pred_check_branch
        %626 = sbr.rel (%p624) target = $region48
      $region47: #{label_predict_forward.1} parent=43 // pred_region
        %s627 = smul.u32 2, %s19
      $region48: #{label_predict_forward.1} parent=43 // pred_fallthru
        _
      // Predicated region
      $region49: #{label_predict_forward.1} parent=43 // pred_check
        %p628 = pneg %p199
      $region50: #{label_predict_forward.1} parent=43 // pred_check_branch
        %630 = sbr.rel (%p628) target = $region52
      $region51: #{label_predict_forward.1} parent=43 // pred_region
        %s631 = smul.u32 2, %s19
      $region52: #{label_predict_forward.1} parent=43 // pred_fallthru
        _
    $region44: #{label_predict_forward.1} parent=5 // pred_fallthru
      _
    %p632 = scmp.le.s32.totalorder 2, %s14
    // Predicated region
    $region53: #{label_predict_forward.1} parent=5 // pred_check
      %p633 = pneg %p632
    $region54: #{label_predict_forward.1} parent=5 // pred_check_branch
      %635 = sbr.rel (%p633) target = $region56
    $region55: #{label_predict_forward.1} parent=5 // pred_region
      %s636 = ssub.s32 %s14, 2
      // Predicated region
      $region57: #{label_predict_forward.1} parent=55 // pred_check
        %p637 = pneg %p179
      $region58: #{label_predict_forward.1} parent=55 // pred_check_branch
        %639 = sbr.rel (%p637) target = $region60
      $region59: #{label_predict_forward.1} parent=55 // pred_region
        %s640 = smul.u32 2, %s20
        %p641 = scmp.lt.s32.totalorder %s640, 3
        %s642 = scalar_select %p641, %s640, 3
        %s643 = smul.addr %s642, 2
        %s644 = scalar_lea.vmem %s6, %s643
      $region60: #{label_predict_forward.1} parent=55 // pred_fallthru
        _
      // Predicated region
      $region61: #{label_predict_forward.1} parent=55 // pred_check
        %p645 = pneg %p205
      $region62: #{label_predict_forward.1} parent=55 // pred_check_branch
        %647 = sbr.rel (%p645) target = $region64
      $region63: #{label_predict_forward.1} parent=55 // pred_region
        %s648 = smul.u32 2, %s20
        %p649 = scmp.lt.s32.totalorder %s648, 3
        %s650 = scalar_select %p649, %s648, 3
        %s651 = scalar_lea.vmem %s7, %s650
      $region64: #{label_predict_forward.1} parent=55 // pred_fallthru
        _
    $region56: #{label_predict_forward.1} parent=5 // pred_fallthru
      _
  $region6: #{label_predict_forward.1} parent=0 // loop_footer
    %s18 = sadd.s32 1, %s14
  $region7: #{label_predict_forward.1} parent=0 // loop_footer_branch
    %13 = sbr.rel target = $region3
  $region8: #{label_predict_forward.1} parent=0 // loop_exit
    _

</llo_original>
